<compile_context>
chip_gen: v6e
topology: v6e:2x2x1
jax: 0.10.0
libtpu: 0.0.40
codegen_flags: <defaults>
</compile_context>

<pallas_src>
import jax
import jax.numpy as jnp
from jax.experimental import pallas as pl
from jax.experimental.pallas import tpu as pltpu


def actor_kernel(x_ref,
                 w1_ref, b1_ref,
                 w2_ref, b2_ref,
                 w3_ref, b3_ref,
                 wo_ref, bo_ref,
                 out_ref):
    mm = w1_ref.dtype  # matmul / inter-layer activation dtype (bf16 by default)

    def dense(a_mm, w_ref, b_ref):
        # MXU matmul with f32 accumulation; bias add stays in f32.
        return jnp.dot(a_mm, w_ref[...],
                       preferred_element_type=jnp.float32) + b_ref[...]

    # relu on the f32 accumulator, then one downcast per layer so every dot
    # consumes same-dtype (bf16) operands with no in-kernel weight upcast.
    a = jnp.maximum(dense(x_ref[...].astype(mm), w1_ref, b1_ref), 0.0).astype(mm)
    a = jnp.maximum(dense(a, w2_ref, b2_ref), 0.0).astype(mm)
    a = jnp.maximum(dense(a, w3_ref, b3_ref), 0.0).astype(mm)
    o = dense(a, wo_ref, bo_ref)                       # (block_b, A) in f32
    out_ref[...] = (jax.nn.sigmoid(o) * 3.5).astype(out_ref.dtype)


def pack_actor_params(params, matmul_dtype=jnp.bfloat16):
    """One-time parameter packing (do at init / after each optimizer update).

    Weights -> matmul dtype (halves weight DMA bytes for bf16); biases stay
    f32 (added post f32-accumulation).  Packing once removes all per-call
    cast/pad ops from the forward graph.  Use matmul_dtype=jnp.float32 on v5e.
    """
    return (params["w1"].astype(matmul_dtype), params["b1"].astype(jnp.float32),
            params["w2"].astype(matmul_dtype), params["b2"].astype(jnp.float32),
            params["w3"].astype(matmul_dtype), params["b3"].astype(jnp.float32),
            params["wo"].astype(matmul_dtype), params["bo"].astype(jnp.float32))


def actor_forward(x, packed_params, *, block_b=None):
    """x: (B, state_dim) float32; packed_params from pack_actor_params.

    Returns (B, action_dim) float32.
    """
    B, S = x.shape
    w1, b1, w2, b2, w3, b3, wo, bo = packed_params
    H1, H2, H3, A = w1.shape[1], w2.shape[1], w3.shape[1], wo.shape[1]

    # Batch tile:
    #  * B <= 16: one grid step (typical single-state inference path).
    #  * otherwise: >= 2 sublane-aligned steps so the 'parallel' grid axis can
    #    be sharded across v7x's two TensorCores; capped at 1024 so single-TC
    #    v5e/v6e pay few ~0.35us per-step overheads.
    if block_b is None:
        if B <= 16:
            block_b = B
        else:
            block_b = min(1024, ((pl.cdiv(B, 2) + 7) // 8) * 8)
    block_b = min(block_b, B)
    if block_b < B:
        block_b = max(8, (block_b // 8) * 8)  # sublane-aligned tile
    n_b = pl.cdiv(B, block_b)
    # NOTE: if B % block_b != 0 the trailing partial block computes on padded
    # rows; those rows are masked off at writeback (benign, do not "fix").

    param_arrays = (w1, b1, w2, b2, w3, b3, wo, bo)

    def param_spec(arr):
        # Constant index_map => each parameter tile is DMA'd once and stays
        # resident in VMEM across all grid steps.
        return pl.BlockSpec(arr.shape, lambda i: (0,) * arr.ndim)

    grid_spec = pltpu.PrefetchScalarGridSpec(
        num_scalar_prefetch=0,
        grid=(n_b,),
        in_specs=[pl.BlockSpec((block_b, S), lambda i: (i, 0))]
                 + [param_spec(a) for a in param_arrays],
        # Unpadded output block: last dim A equals the full array dim (legal),
        # no post-kernel slice, no HBM write amplification.
        out_specs=pl.BlockSpec((block_b, A), lambda i: (i, 0)),
    )

    # Advisory cost so XLA schedules sensibly around the custom call inside a
    # larger DDPG step.
    flops = 2 * B * (S * H1 + H1 * H2 + H2 * H3 + H3 * A)
    bytes_accessed = (x.size * x.dtype.itemsize
                      + sum(a.size * a.dtype.itemsize for a in param_arrays)
                      + B * A * 4)
    cost = pl.CostEstimate(flops=flops, transcendentals=B * A,
                           bytes_accessed=bytes_accessed)

    return pl.pallas_call(
        actor_kernel,
        out_shape=jax.ShapeDtypeStruct((B, A), jnp.float32),
        grid_spec=grid_spec,
        compiler_params=pltpu.CompilerParams(
            dimension_semantics=("parallel",)),
        cost_estimate=cost,
    )(x, *param_arrays)


def init_actor_params(key, state_dim, action_dim):
    """Deterministic init matching the module's shapes.

    Hidden layers: PyTorch default Linear init ~ U(-1/sqrt(fan_in), 1/sqrt(fan_in)).
    Output layer: U(-0.003, 0.003) for weight and bias (as in __init__).
    Weights stored as (in, out).
    """
    ks = jax.random.split(key, 8)

    def linear(kw, kb, fan_in, fan_out, bound=None):
        if bound is None:
            bound = 1.0 / (fan_in ** 0.5)
        w = jax.random.uniform(kw, (fan_in, fan_out), jnp.float32, -bound, bound)
        b = jax.random.uniform(kb, (1, fan_out), jnp.float32, -bound, bound)
        return w, b

    w1, b1 = linear(ks[0], ks[1], state_dim, 256)
    w2, b2 = linear(ks[2], ks[3], 256, 128)
    w3, b3 = linear(ks[4], ks[5], 128, 128)
    wo, bo = linear(ks[6], ks[7], 128, action_dim, bound=0.003)
    return dict(w1=w1, b1=b1, w2=w2, b2=b2, w3=w3, b3=b3, wo=wo, bo=bo)


def actor_reference(x, p, matmul_dtype=jnp.float32):
    def dense(a, w, b):
        return jnp.dot(a.astype(matmul_dtype), w.astype(matmul_dtype),
                       preferred_element_type=jnp.float32) + b
    a = jax.nn.relu(dense(x, p["w1"], p["b1"]))
    a = jax.nn.relu(dense(a, p["w2"], p["b2"]))
    a = jax.nn.relu(dense(a, p["w3"], p["b3"]))
    return jax.nn.sigmoid(dense(a, p["wo"], p["bo"])) * 3.5


if __name__ == "__main__":
    key = jax.random.PRNGKey(0)
    k_x, k_x2, k_p = jax.random.split(key, 3)

    state_dim, action_dim = 16, 4
    params = init_actor_params(k_p, state_dim, action_dim)
    packed = pack_actor_params(params)      # one-time packing (not per call)

    fwd = jax.jit(actor_forward)

    # Small batch: single grid step (matches the module's typical usage).
    x_small = jax.random.normal(k_x, (8, state_dim), jnp.float32)
    out_small = jax.block_until_ready(fwd(x_small, packed))
    assert out_small.shape == (8, action_dim)
    ref_bf16 = actor_reference(x_small, params, matmul_dtype=jnp.bfloat16)
    ref_f32 = actor_reference(x_small, params)
    assert jnp.allclose(out_small, ref_bf16, atol=5e-3, rtol=5e-3), \
        "mismatch vs bf16-matmul reference (small batch)"
    assert jnp.allclose(out_small, ref_f32, atol=5e-2, rtol=5e-2), \
        "mismatch vs f32 reference (small batch)"

    # Larger batch: two parallel grid steps (shardable across v7x's two TCs).
    x_big = jax.random.normal(k_x2, (64, state_dim), jnp.float32)
    out_big = jax.block_until_ready(fwd(x_big, packed))
    assert out_big.shape == (64, action_dim)
    ref_big = actor_reference(x_big, params, matmul_dtype=jnp.bfloat16)
    assert jnp.allclose(out_big, ref_big, atol=5e-3, rtol=5e-3), \
        "mismatch vs bf16-matmul reference (large batch)"

    print("KERNEL_OK")
</pallas_src>

<mosaic_0001>
module attributes {stable_mosaic.version = 11 : i64} {
  func.func @actor_kernel(%arg0: i32, %arg1: memref<8x16xf32, #tpu.memory_space<vmem>>, %arg2: memref<16x256xbf16, #tpu.memory_space<vmem>>, %arg3: memref<1x256xf32, #tpu.memory_space<vmem>>, %arg4: memref<256x128xbf16, #tpu.memory_space<vmem>>, %arg5: memref<1x128xf32, #tpu.memory_space<vmem>>, %arg6: memref<128x128xbf16, #tpu.memory_space<vmem>>, %arg7: memref<1x128xf32, #tpu.memory_space<vmem>>, %arg8: memref<128x4xbf16, #tpu.memory_space<vmem>>, %arg9: memref<1x4xf32, #tpu.memory_space<vmem>>, %arg10: memref<8x4xf32, #tpu.memory_space<vmem>>) attributes {dimension_semantics = [#tpu.dimension_semantics<parallel>], iteration_bounds = array<i64: 1>, scalar_prefetch = 0 : i64, scratch_operands = 0 : i64, tpu.core_type = #tpu.core_type<tc>, window_params = [{transform_indices = @transform_0, window_bounds = array<i64: 8, 16>}, {pipeline_mode = #tpu.pipeline_mode<synchronous>, transform_indices = @transform_1, window_bounds = array<i64: 16, 256>}, {pipeline_mode = #tpu.pipeline_mode<synchronous>, transform_indices = @transform_2, window_bounds = array<i64: 1, 256>}, {pipeline_mode = #tpu.pipeline_mode<synchronous>, transform_indices = @transform_3, window_bounds = array<i64: 256, 128>}, {pipeline_mode = #tpu.pipeline_mode<synchronous>, transform_indices = @transform_4, window_bounds = array<i64: 1, 128>}, {pipeline_mode = #tpu.pipeline_mode<synchronous>, transform_indices = @transform_5, window_bounds = array<i64: 128, 128>}, {pipeline_mode = #tpu.pipeline_mode<synchronous>, transform_indices = @transform_6, window_bounds = array<i64: 1, 128>}, {pipeline_mode = #tpu.pipeline_mode<synchronous>, transform_indices = @transform_7, window_bounds = array<i64: 128, 4>}, {pipeline_mode = #tpu.pipeline_mode<synchronous>, transform_indices = @transform_8, window_bounds = array<i64: 1, 4>}, {transform_indices = @transform_9, window_bounds = array<i64: 8, 4>}]} {
    %c0 = arith.constant 0 : index
    %c0_0 = arith.constant 0 : index
    %0 = vector.load %arg1[%c0, %c0_0] : memref<8x16xf32, #tpu.memory_space<vmem>>, vector<8x16xf32>
    %1 = arith.truncf %0 : vector<8x16xf32> to vector<8x16xbf16>
    %c0_1 = arith.constant 0 : index
    %c0_2 = arith.constant 0 : index
    %2 = vector.load %arg2[%c0_1, %c0_2] : memref<16x256xbf16, #tpu.memory_space<vmem>>, vector<16x256xbf16>
    %cst = arith.constant dense<0.000000e+00> : vector<8x256xf32>
    %3 = tpu.matmul %1, %2, %cst {dimension_numbers = #tpu.dot_dimension_numbers<[1], [0], [0], [1], [0, 0, 1, 1], [], []>} : vector<8x16xbf16>, vector<16x256xbf16>, vector<8x256xf32> -> vector<8x256xf32>
    %c0_3 = arith.constant 0 : index
    %c0_4 = arith.constant 0 : index
    %4 = vector.load %arg3[%c0_3, %c0_4] : memref<1x256xf32, #tpu.memory_space<vmem>>, vector<1x256xf32>
    %5 = vector.broadcast %4 : vector<1x256xf32> to vector<8x256xf32>
    %6 = arith.addf %3, %5 : vector<8x256xf32>
    %cst_5 = arith.constant 0.000000e+00 : f32
    %7 = vector.broadcast %cst_5 : f32 to vector<8x256xf32>
    %8 = arith.maximumf %6, %7 : vector<8x256xf32>
    %9 = arith.truncf %8 : vector<8x256xf32> to vector<8x256xbf16>
    %c0_6 = arith.constant 0 : index
    %c0_7 = arith.constant 0 : index
    %10 = vector.load %arg4[%c0_6, %c0_7] : memref<256x128xbf16, #tpu.memory_space<vmem>>, vector<256x128xbf16>
    %cst_8 = arith.constant dense<0.000000e+00> : vector<8x128xf32>
    %11 = tpu.matmul %9, %10, %cst_8 {dimension_numbers = #tpu.dot_dimension_numbers<[1], [0], [0], [1], [0, 0, 1, 1], [], []>} : vector<8x256xbf16>, vector<256x128xbf16>, vector<8x128xf32> -> vector<8x128xf32>
    %c0_9 = arith.constant 0 : index
    %c0_10 = arith.constant 0 : index
    %12 = vector.load %arg5[%c0_9, %c0_10] : memref<1x128xf32, #tpu.memory_space<vmem>>, vector<1x128xf32>
    %13 = vector.broadcast %12 : vector<1x128xf32> to vector<8x128xf32>
    %14 = arith.addf %11, %13 : vector<8x128xf32>
    %cst_11 = arith.constant 0.000000e+00 : f32
    %15 = vector.broadcast %cst_11 : f32 to vector<8x128xf32>
    %16 = arith.maximumf %14, %15 : vector<8x128xf32>
    %17 = arith.truncf %16 : vector<8x128xf32> to vector<8x128xbf16>
    %c0_12 = arith.constant 0 : index
    %c0_13 = arith.constant 0 : index
    %18 = vector.load %arg6[%c0_12, %c0_13] : memref<128x128xbf16, #tpu.memory_space<vmem>>, vector<128x128xbf16>
    %cst_14 = arith.constant dense<0.000000e+00> : vector<8x128xf32>
    %19 = tpu.matmul %17, %18, %cst_14 {dimension_numbers = #tpu.dot_dimension_numbers<[1], [0], [0], [1], [0, 0, 1, 1], [], []>} : vector<8x128xbf16>, vector<128x128xbf16>, vector<8x128xf32> -> vector<8x128xf32>
    %c0_15 = arith.constant 0 : index
    %c0_16 = arith.constant 0 : index
    %20 = vector.load %arg7[%c0_15, %c0_16] : memref<1x128xf32, #tpu.memory_space<vmem>>, vector<1x128xf32>
    %21 = vector.broadcast %20 : vector<1x128xf32> to vector<8x128xf32>
    %22 = arith.addf %19, %21 : vector<8x128xf32>
    %cst_17 = arith.constant 0.000000e+00 : f32
    %23 = vector.broadcast %cst_17 : f32 to vector<8x128xf32>
    %24 = arith.maximumf %22, %23 : vector<8x128xf32>
    %25 = arith.truncf %24 : vector<8x128xf32> to vector<8x128xbf16>
    %c0_18 = arith.constant 0 : index
    %c0_19 = arith.constant 0 : index
    %26 = vector.load %arg8[%c0_18, %c0_19] : memref<128x4xbf16, #tpu.memory_space<vmem>>, vector<128x4xbf16>
    %cst_20 = arith.constant dense<0.000000e+00> : vector<8x4xf32>
    %27 = tpu.matmul %25, %26, %cst_20 {dimension_numbers = #tpu.dot_dimension_numbers<[1], [0], [0], [1], [0, 0, 1, 1], [], []>} : vector<8x128xbf16>, vector<128x4xbf16>, vector<8x4xf32> -> vector<8x4xf32>
    %c0_21 = arith.constant 0 : index
    %c0_22 = arith.constant 0 : index
    %28 = vector.load %arg9[%c0_21, %c0_22] : memref<1x4xf32, #tpu.memory_space<vmem>>, vector<1x4xf32>
    %29 = vector.broadcast %28 : vector<1x4xf32> to vector<8x4xf32>
    %30 = arith.addf %27, %29 : vector<8x4xf32>
    %31 = arith.negf %30 : vector<8x4xf32>
    %32 = math.exp %31 : vector<8x4xf32>
    %cst_23 = arith.constant 1.000000e+00 : f32
    %33 = vector.broadcast %cst_23 : f32 to vector<8x4xf32>
    %34 = arith.addf %33, %32 : vector<8x4xf32>
    %35 = arith.divf %33, %34 : vector<8x4xf32>
    %cst_24 = arith.constant 3.500000e+00 : f32
    %36 = vector.broadcast %cst_24 : f32 to vector<8x4xf32>
    %37 = arith.mulf %35, %36 : vector<8x4xf32>
    %c0_25 = arith.constant 0 : index
    %c0_26 = arith.constant 0 : index
    %38 = vector.load %arg10[%c0_25, %c0_26] : memref<8x4xf32, #tpu.memory_space<vmem>>, vector<8x4xf32>
    tpu.vector_store %arg10[%c0_25, %c0_26], %37 {strides = array<i32>} : memref<8x4xf32, #tpu.memory_space<vmem>>, vector<8x4xf32>,
    return
  }
  func.func @transform_0(%arg0: i32) -> (i32, i32) {
    %c0_i32 = arith.constant 0 : i32
    %c0_i32_0 = arith.constant 0 : i32
    return %arg0, %c0_i32 : i32, i32
  }
  func.func @transform_1(%arg0: i32) -> (i32, i32) {
    %c0_i32 = arith.constant 0 : i32
    %c0_i32_0 = arith.constant 0 : i32
    %c0_i32_1 = arith.constant 0 : i32
    return %c0_i32, %c0_i32_0 : i32, i32
  }
  func.func @transform_2(%arg0: i32) -> (i32, i32) {
    %c0_i32 = arith.constant 0 : i32
    %c0_i32_0 = arith.constant 0 : i32
    %c0_i32_1 = arith.constant 0 : i32
    return %c0_i32, %c0_i32_0 : i32, i32
  }
  func.func @transform_3(%arg0: i32) -> (i32, i32) {
    %c0_i32 = arith.constant 0 : i32
    %c0_i32_0 = arith.constant 0 : i32
    %c0_i32_1 = arith.constant 0 : i32
    return %c0_i32, %c0_i32_0 : i32, i32
  }
  func.func @transform_4(%arg0: i32) -> (i32, i32) {
    %c0_i32 = arith.constant 0 : i32
    %c0_i32_0 = arith.constant 0 : i32
    %c0_i32_1 = arith.constant 0 : i32
    return %c0_i32, %c0_i32_0 : i32, i32
  }
  func.func @transform_5(%arg0: i32) -> (i32, i32) {
    %c0_i32 = arith.constant 0 : i32
    %c0_i32_0 = arith.constant 0 : i32
    %c0_i32_1 = arith.constant 0 : i32
    return %c0_i32, %c0_i32_0 : i32, i32
  }
  func.func @transform_6(%arg0: i32) -> (i32, i32) {
    %c0_i32 = arith.constant 0 : i32
    %c0_i32_0 = arith.constant 0 : i32
    %c0_i32_1 = arith.constant 0 : i32
    return %c0_i32, %c0_i32_0 : i32, i32
  }
  func.func @transform_7(%arg0: i32) -> (i32, i32) {
    %c0_i32 = arith.constant 0 : i32
    %c0_i32_0 = arith.constant 0 : i32
    %c0_i32_1 = arith.constant 0 : i32
    return %c0_i32, %c0_i32_0 : i32, i32
  }
  func.func @transform_8(%arg0: i32) -> (i32, i32) {
    %c0_i32 = arith.constant 0 : i32
    %c0_i32_0 = arith.constant 0 : i32
    %c0_i32_1 = arith.constant 0 : i32
    return %c0_i32, %c0_i32_0 : i32, i32
  }
  func.func @transform_9(%arg0: i32) -> (i32, i32) {
    %c0_i32 = arith.constant 0 : i32
    %c0_i32_0 = arith.constant 0 : i32
    return %arg0, %c0_i32 : i32, i32
  }
}

</mosaic_0001>

<llo_original>
// kernel: actor_forward.1
$region0: #{actor_forward.1}
  #allocation0 [shape = 'u32[]', space=smem, size = 0x4, offset = 0x4, fixed_abs, tag = 'smem constant byte address 0x4 - core index']
  #allocation1 [shape = 'u32[144,128]{1,0:T(1,128)}', space=vmem, size = 0x12000, scoped, tag = 'internal scratch']
  %s0 = inlined_call_operand.vmem [shape: f32[8,16], index: 0, kind: input, shape index: {}]
  %s1 = inlined_call_operand.hbm [shape: bf16[16,256], index: 1, kind: input, shape index: {}]
  %s2 = inlined_call_operand.vmem [shape: f32[1,256], index: 2, kind: input, shape index: {}]
  %s3 = inlined_call_operand.hbm [shape: bf16[256,128], index: 3, kind: input, shape index: {}]
  %s4 = inlined_call_operand.hbm [shape: f32[1,128], index: 4, kind: input, shape index: {}]
  %s5 = inlined_call_operand.vmem [shape: bf16[128,128], index: 5, kind: input, shape index: {}]
  %s6 = inlined_call_operand.hbm [shape: f32[1,128], index: 6, kind: input, shape index: {}]
  %s7 = inlined_call_operand.vmem [shape: bf16[128,4], index: 7, kind: input, shape index: {}]
  %s8 = inlined_call_operand.vmem [shape: f32[1,4], index: 8, kind: input, shape index: {}]
  %s9 = inlined_call_operand.vmem [shape: f32[8,4], index: 9, kind: output, shape index: {}]
  %s10 = sld [smem:[#allocation0]]
  $region62: #{actor_forward.1} parent=0
    _
  %s12 = ssub.s32 1, %s10
  %s13 = scalar_select 0, %s12, %s10
  $region1: #{actor_forward.1} parent=0
    #allocation2 [shape = 'u8[8192]{0}', space=vmem, size = 0x2000, scoped, tag = 'input window, operand 1, single buffered']
    #allocation3 [shape = 's32[1]{0}', space=sflag, size = 0x4, scoped, tag = 'scoped memory for actor_forward.1']
    #allocation4 [shape = 'u8[65536]{0}', space=vmem, size = 0x10000, scoped, tag = 'input window, operand 3, single buffered']
    #allocation5 [shape = 's32[1]{0}', space=sflag, size = 0x4, scoped, tag = 'scoped memory for actor_forward.1']
    #allocation6 [shape = 'u8[512]{0}', space=vmem, size = 0x400, scoped, tag = 'input window, operand 4, single buffered']
    #allocation7 [shape = 'u8[512]{0}', space=vmem, size = 0x400, scoped, tag = 'input window, operand 6, single buffered']
    #allocation8 [shape = 's32[1]{0}', space=sflag, size = 0x4, scoped, tag = 'scoped memory for actor_forward.1']
    %14 = vsyncpa [#allocation3], 0
    %15 = vsyncpa [#allocation5], 0
    %16 = vsyncpa [#allocation8], 0
    // Predicated region
    $region2: #{actor_forward.1} parent=1 // pred_check
      _
    $region3: #{actor_forward.1} parent=1 // pred_check_branch
      %18 = sbr.rel (0) target = $region5
    $region4: #{actor_forward.1} parent=1 // pred_region
      _
    $region5: #{actor_forward.1} parent=1 // pred_fallthru
      _
    // Predicated region
    $region6: #{actor_forward.1} parent=1 // pred_check
      _
    $region7: #{actor_forward.1} parent=1 // pred_check_branch
      %20 = sbr.rel (0) target = $region9
    $region8: #{actor_forward.1} parent=1 // pred_region
      %s22 = ssub.s32 256, 256
      %23 = vsyncadd [#allocation3], %s22
      %s24 = sshll.u32 [#allocation2], 4
      %s25 = int_to_ptr.vmem [resolvable:$true] %s24
      %30 = dma.hbm_to_vmem [thread:$0]  %s1, 256, %s25, [#allocation3], 128, 128, 8
    $region9: #{actor_forward.1} parent=1 // pred_fallthru
      _
    // Predicated region
    $region10: #{actor_forward.1} parent=1 // pred_check
      _
    $region11: #{actor_forward.1} parent=1 // pred_check_branch
      %32 = sbr.rel (0) target = $region13
    $region12: #{actor_forward.1} parent=1 // pred_region
      _
    $region13: #{actor_forward.1} parent=1 // pred_fallthru
      _
    // Predicated region
    $region14: #{actor_forward.1} parent=1 // pred_check
      _
    $region15: #{actor_forward.1} parent=1 // pred_check_branch
      %34 = sbr.rel (0) target = $region17
    $region16: #{actor_forward.1} parent=1 // pred_region
      %s36 = ssub.s32 2048, 2048
      %37 = vsyncadd [#allocation5], %s36
      %s38 = sshll.u32 [#allocation4], 4
      %s39 = int_to_ptr.vmem [resolvable:$true] %s38
      %44 = dma.hbm_to_vmem [thread:$0]  %s3, 2048, %s39, [#allocation5], 64, 64, 4
    $region17: #{actor_forward.1} parent=1 // pred_fallthru
      _
    // Predicated region
    $region18: #{actor_forward.1} parent=1 // pred_check
      _
    $region19: #{actor_forward.1} parent=1 // pred_check_branch
      %46 = sbr.rel (0) target = $region21
    $region20: #{actor_forward.1} parent=1 // pred_region
      %s48 = ssub.s32 16, 16
      %49 = vsyncadd [#allocation5], %s48
      %s51 = sshll.u32 [#allocation6], 4
      %s52 = int_to_ptr.vmem [resolvable:$true] %s51
      %54 = dma.hbm_to_vmem [thread:$0]  %s4, 16, %s52, [#allocation5]
    $region21: #{actor_forward.1} parent=1 // pred_fallthru
      _
    // Predicated region
    $region22: #{actor_forward.1} parent=1 // pred_check
      _
    $region23: #{actor_forward.1} parent=1 // pred_check_branch
      %56 = sbr.rel (0) target = $region25
    $region24: #{actor_forward.1} parent=1 // pred_region
      _
    $region25: #{actor_forward.1} parent=1 // pred_fallthru
      _
    // Predicated region
    $region26: #{actor_forward.1} parent=1 // pred_check
      _
    $region27: #{actor_forward.1} parent=1 // pred_check_branch
      %58 = sbr.rel (0) target = $region29
    $region28: #{actor_forward.1} parent=1 // pred_region
      %s60 = ssub.s32 16, 16
      %61 = vsyncadd [#allocation8], %s60
      %s63 = sshll.u32 [#allocation7], 4
      %s64 = int_to_ptr.vmem [resolvable:$true] %s63
      %66 = dma.hbm_to_vmem [thread:$0]  %s6, 16, %s64, [#allocation8]
    $region29: #{actor_forward.1} parent=1 // pred_fallthru
      _
    // Predicated region
    $region30: #{actor_forward.1} parent=1 // pred_check
      _
    $region31: #{actor_forward.1} parent=1 // pred_check_branch
      %68 = sbr.rel (0) target = $region33
    $region32: #{actor_forward.1} parent=1 // pred_region
      _
    $region33: #{actor_forward.1} parent=1 // pred_fallthru
      _
    // Predicated region
    $region34: #{actor_forward.1} parent=1 // pred_check
      _
    $region35: #{actor_forward.1} parent=1 // pred_check_branch
      %70 = sbr.rel (0) target = $region37
    $region36: #{actor_forward.1} parent=1 // pred_region
      _
    $region37: #{actor_forward.1} parent=1 // pred_fallthru
      _
    // Predicated region
    $region38: #{actor_forward.1} parent=1 // pred_check
      _
    $region39: #{actor_forward.1} parent=1 // pred_check_branch
      %72 = sbr.rel (0) target = $region41
    $region40: #{actor_forward.1} parent=1 // pred_region
      %73 = dma.done [#allocation3], 256
    $region41: #{actor_forward.1} parent=1 // pred_fallthru
      _
    // Predicated region
    $region42: #{actor_forward.1} parent=1 // pred_check
      _
    $region43: #{actor_forward.1} parent=1 // pred_check_branch
      %75 = sbr.rel (0) target = $region45
    $region44: #{actor_forward.1} parent=1 // pred_region
      %76 = dma.done [#allocation5], 2048
    $region45: #{actor_forward.1} parent=1 // pred_fallthru
      _
    // Predicated region
    $region46: #{actor_forward.1} parent=1 // pred_check
      _
    $region47: #{actor_forward.1} parent=1 // pred_check_branch
      %78 = sbr.rel (0) target = $region49
    $region48: #{actor_forward.1} parent=1 // pred_region
      %79 = dma.done [#allocation5], 16
    $region49: #{actor_forward.1} parent=1 // pred_fallthru
      _
    // Predicated region
    $region50: #{actor_forward.1} parent=1 // pred_check
      _
    $region51: #{actor_forward.1} parent=1 // pred_check_branch
      %81 = sbr.rel (0) target = $region53
    $region52: #{actor_forward.1} parent=1 // pred_region
      %82 = dma.done [#allocation8], 16
    $region53: #{actor_forward.1} parent=1 // pred_fallthru
      _
    %v84 = vld [vmem:[%s0] sm:$0xff]
    %v85 = vpack.c.bf16 %v84, %v84
    %v86 = vld [vmem:[#allocation2] sm:$0xff]
    %v87 = vld [vmem:[#allocation2 + $0x8] sm:$0xff]
    %v88 = vld [vmem:[%s2] sm:$0x3]
    %v90 = vlaneseq
    %v91 = vshrl.u32 %v90, 7
    %v92 = vsub.s32 0, %v91
    %v93 = vrot.slane %v88, %v92
    %v94 = vlaneseq
    %v95 = vshrl.u32 %v94, 7
    %v96 = vsub.s32 1, %v95
    %v97 = vrot.slane %v88, %v96
    %v102 = vunpack.c.l.b16 %v86
    %v103 = vunpack.c.h.b16 %v86
    %v104 = vunpack.c.l.b16 %v87
    %v105 = vunpack.c.h.b16 %v87
    %v106 = vpack.c.b16 %v104, %v102
    %v107 = vpack.c.b16 %v105, %v103
    %vm110 = vcmask 130048
    %v112 = vsel %vm110, %v85, 0
    %114 = vmatprep.subr.bf16.mxu0 0
    %115 = vmatpush1.bf16.msra.mxu0 0
    %116 = vmatprep.subr.bf16.mxu0 0
    %117 = vmatpush1.bf16.msra.mxu0 0
    %118 = vmatprep.subr.bf16.mxu0 0
    %119 = vmatpush1.bf16.msra.mxu0 0
    %120 = vmatprep.subr.bf16.mxu0 0
    %121 = vmatpush1.bf16.msra.mxu0 0
    %122 = vmatprep.subr.bf16.mxu0 0
    %123 = vmatpush1.bf16.msra.mxu0 0
    %124 = vmatprep.subr.bf16.mxu0 0
    %125 = vmatpush1.bf16.msra.mxu0 0
    %126 = vmatprep.subr.bf16.mxu0 0
    %127 = vmatpush1.bf16.msra.mxu0 0
    %128 = vmatprep.subr.bf16.mxu0 %v107
    %129 = vmatpush1.bf16.msra.mxu0 %v106
    %130 = vmatprep.subr.bf16.mxu0 0
    %131 = vmatpush2.bf16.msra.mxu0 0
    %132 = vmatprep.subr.bf16.mxu0 0
    %133 = vmatpush2.bf16.msra.mxu0 0
    %134 = vmatprep.subr.bf16.mxu0 0
    %135 = vmatpush2.bf16.msra.mxu0 0
    %136 = vmatprep.subr.bf16.mxu0 0
    %137 = vmatpush2.bf16.msra.mxu0 0
    %138 = vmatprep.subr.bf16.mxu0 0
    %139 = vmatpush2.bf16.msra.mxu0 0
    %140 = vmatprep.subr.bf16.mxu0 0
    %141 = vmatpush2.bf16.msra.mxu0 0
    %142 = vmatprep.subr.bf16.mxu0 0
    %143 = vmatpush2.bf16.msra.mxu0 0
    %144 = vmatprep.subr.bf16.mxu0 0
    %145 = vmatpush2.bf16.msra.mxu0 0
    %146 = vmatprep.mubr.bf16.mxu0 0
    %147 = vmatmul.mubr.bf16.gmra.mxu0 %v112
    %v148 = vpop.f32.mrf.mxu0
    %v149 = vadd.f32 %v93, %v148
    %v150 = vpop.f32.mrf.mxu0
    %v151 = vadd.f32 %v97, %v150
    %v152 = vpop.f32.mrf.mxu0
    %v153 = vpop.f32.mrf.mxu0
    %154 = vdwg.mxu0
    %v155 = vmax.f32 %v149, 0.0
    %v156 = vmax.f32 %v151, 0.0
    %v157 = vpack.c.bf16 %v155, %v155
    %v158 = vpack.c.bf16 %v156, %v156
    %v159 = vld [vmem:[#allocation4] sm:$0xf]
    %v160 = vld [vmem:[#allocation4 + $0x4] sm:$0xf]
    %v161 = vld [vmem:[#allocation4 + $0x8] sm:$0xf]
    %v162 = vld [vmem:[#allocation4 + $0xc] sm:$0xf]
    %v163 = vld [vmem:[#allocation4 + $0x10] sm:$0xf]
    %v164 = vld [vmem:[#allocation4 + $0x14] sm:$0xf]
    %v165 = vld [vmem:[#allocation4 + $0x18] sm:$0xf]
    %v166 = vld [vmem:[#allocation4 + $0x1c] sm:$0xf]
    %v167 = vld [vmem:[#allocation4 + $0x20] sm:$0xf]
    %v168 = vld [vmem:[#allocation4 + $0x24] sm:$0xf]
    %v169 = vld [vmem:[#allocation4 + $0x28] sm:$0xf]
    %v170 = vld [vmem:[#allocation4 + $0x2c] sm:$0xf]
    %v171 = vld [vmem:[#allocation4 + $0x30] sm:$0xf]
    %v172 = vld [vmem:[#allocation4 + $0x34] sm:$0xf]
    %v173 = vld [vmem:[#allocation4 + $0x38] sm:$0xf]
    %v174 = vld [vmem:[#allocation4 + $0x3c] sm:$0xf]
    %v175 = vld [vmem:[#allocation4 + $0x40] sm:$0xf]
    %v176 = vld [vmem:[#allocation4 + $0x44] sm:$0xf]
    %v177 = vld [vmem:[#allocation4 + $0x48] sm:$0xf]
    %v178 = vld [vmem:[#allocation4 + $0x4c] sm:$0xf]
    %v179 = vld [vmem:[#allocation4 + $0x50] sm:$0xf]
    %v180 = vld [vmem:[#allocation4 + $0x54] sm:$0xf]
    %v181 = vld [vmem:[#allocation4 + $0x58] sm:$0xf]
    %v182 = vld [vmem:[#allocation4 + $0x5c] sm:$0xf]
    %v183 = vld [vmem:[#allocation4 + $0x60] sm:$0xf]
    %v184 = vld [vmem:[#allocation4 + $0x64] sm:$0xf]
    %v185 = vld [vmem:[#allocation4 + $0x68] sm:$0xf]
    %v186 = vld [vmem:[#allocation4 + $0x6c] sm:$0xf]
    %v187 = vld [vmem:[#allocation4 + $0x70] sm:$0xf]
    %v188 = vld [vmem:[#allocation4 + $0x74] sm:$0xf]
    %v189 = vld [vmem:[#allocation4 + $0x78] sm:$0xf]
    %v190 = vld [vmem:[#allocation4 + $0x7c] sm:$0xf]
    %v191 = vld [vmem:[#allocation6] sm:$0x1]
    %v193 = vlaneseq
    %v194 = vshrl.u32 %v193, 7
    %v195 = vsub.s32 0, %v194
    %v196 = vrot.slane %v191, %v195
    %v230 = vunpack.c.l.b16 %v159
    %v231 = vunpack.c.l.b16 %v160
    %v232 = vunpack.c.l.b16 %v161
    %v233 = vunpack.c.l.b16 %v162
    %v234 = vunpack.c.l.b16 %v163
    %v235 = vunpack.c.l.b16 %v164
    %v236 = vunpack.c.l.b16 %v165
    %v237 = vunpack.c.l.b16 %v166
    %v238 = vunpack.c.l.b16 %v167
    %v239 = vunpack.c.l.b16 %v168
    %v240 = vunpack.c.l.b16 %v169
    %v241 = vunpack.c.l.b16 %v170
    %v242 = vunpack.c.l.b16 %v171
    %v243 = vunpack.c.l.b16 %v172
    %v244 = vunpack.c.l.b16 %v173
    %v245 = vunpack.c.l.b16 %v174
    %v246 = vunpack.c.l.b16 %v175
    %v247 = vunpack.c.l.b16 %v176
    %v248 = vunpack.c.l.b16 %v177
    %v249 = vunpack.c.l.b16 %v178
    %v250 = vunpack.c.l.b16 %v179
    %v251 = vunpack.c.l.b16 %v180
    %v252 = vunpack.c.l.b16 %v181
    %v253 = vunpack.c.l.b16 %v182
    %v254 = vunpack.c.l.b16 %v183
    %v255 = vunpack.c.l.b16 %v184
    %v256 = vunpack.c.l.b16 %v185
    %v257 = vunpack.c.l.b16 %v186
    %v258 = vunpack.c.l.b16 %v187
    %v259 = vunpack.c.l.b16 %v188
    %v260 = vunpack.c.l.b16 %v189
    %v261 = vunpack.c.l.b16 %v190
    %v262 = vpack.c.b16 %v231, %v230
    %v263 = vpack.c.b16 %v233, %v232
    %v264 = vpack.c.b16 %v235, %v234
    %v265 = vpack.c.b16 %v237, %v236
    %v266 = vpack.c.b16 %v239, %v238
    %v267 = vpack.c.b16 %v241, %v240
    %v268 = vpack.c.b16 %v243, %v242
    %v269 = vpack.c.b16 %v245, %v244
    %v270 = vpack.c.b16 %v247, %v246
    %v271 = vpack.c.b16 %v249, %v248
    %v272 = vpack.c.b16 %v251, %v250
    %v273 = vpack.c.b16 %v253, %v252
    %v274 = vpack.c.b16 %v255, %v254
    %v275 = vpack.c.b16 %v257, %v256
    %v276 = vpack.c.b16 %v259, %v258
    %v277 = vpack.c.b16 %v261, %v260
    %294 = vmatprep.subr.bf16.mxu0 0
    %295 = vmatpush1.bf16.msra.mxu0 %v269
    %296 = vmatprep.subr.bf16.mxu0 0
    %297 = vmatpush1.bf16.msra.mxu0 %v268
    %298 = vmatprep.subr.bf16.mxu0 0
    %299 = vmatpush1.bf16.msra.mxu0 %v267
    %300 = vmatprep.subr.bf16.mxu0 0
    %301 = vmatpush1.bf16.msra.mxu0 %v266
    %302 = vmatprep.subr.bf16.mxu0 0
    %303 = vmatpush1.bf16.msra.mxu0 %v265
    %304 = vmatprep.subr.bf16.mxu0 0
    %305 = vmatpush1.bf16.msra.mxu0 %v264
    %306 = vmatprep.subr.bf16.mxu0 0
    %307 = vmatpush1.bf16.msra.mxu0 %v263
    %308 = vmatprep.subr.bf16.mxu0 0
    %309 = vmatpush1.bf16.msra.mxu0 %v262
    %310 = vmatprep.subr.bf16.mxu0 0
    %311 = vmatpush2.bf16.msra.mxu0 %v277
    %312 = vmatprep.subr.bf16.mxu0 0
    %313 = vmatpush2.bf16.msra.mxu0 %v276
    %314 = vmatprep.subr.bf16.mxu0 0
    %315 = vmatpush2.bf16.msra.mxu0 %v275
    %316 = vmatprep.subr.bf16.mxu0 0
    %317 = vmatpush2.bf16.msra.mxu0 %v274
    %318 = vmatprep.subr.bf16.mxu0 0
    %319 = vmatpush2.bf16.msra.mxu0 %v273
    %320 = vmatprep.subr.bf16.mxu0 0
    %321 = vmatpush2.bf16.msra.mxu0 %v272
    %322 = vmatprep.subr.bf16.mxu0 0
    %323 = vmatpush2.bf16.msra.mxu0 %v271
    %324 = vmatprep.subr.bf16.mxu0 0
    %325 = vmatpush2.bf16.msra.mxu0 %v270
    %326 = vmatprep.mubr.bf16.mxu0 %v158
    %327 = vmatmul.mubr.bf16.gmra.mxu0 %v157
    %v328 = vpop.f32.mrf.mxu0
    %v329 = vadd.f32 %v196, %v328
    %v330 = vpop.f32.mrf.mxu0
    %v331 = vpop.f32.mrf.mxu0
    %v332 = vpop.f32.mrf.mxu0
    %333 = vdwg.mxu0
    %v334 = vmax.f32 %v329, 0.0
    %v335 = vpack.c.bf16 %v334, %v334
    %v336 = vld [vmem:[%s5] sm:$0xf]
    %v337 = vld [vmem:[%s5 + $0x4] sm:$0xf]
    %v338 = vld [vmem:[%s5 + $0x8] sm:$0xf]
    %v339 = vld [vmem:[%s5 + $0xc] sm:$0xf]
    %v340 = vld [vmem:[%s5 + $0x10] sm:$0xf]
    %v341 = vld [vmem:[%s5 + $0x14] sm:$0xf]
    %v342 = vld [vmem:[%s5 + $0x18] sm:$0xf]
    %v343 = vld [vmem:[%s5 + $0x1c] sm:$0xf]
    %v344 = vld [vmem:[%s5 + $0x20] sm:$0xf]
    %v345 = vld [vmem:[%s5 + $0x24] sm:$0xf]
    %v346 = vld [vmem:[%s5 + $0x28] sm:$0xf]
    %v347 = vld [vmem:[%s5 + $0x2c] sm:$0xf]
    %v348 = vld [vmem:[%s5 + $0x30] sm:$0xf]
    %v349 = vld [vmem:[%s5 + $0x34] sm:$0xf]
    %v350 = vld [vmem:[%s5 + $0x38] sm:$0xf]
    %v351 = vld [vmem:[%s5 + $0x3c] sm:$0xf]
    %v352 = vld [vmem:[#allocation7] sm:$0x1]
    %v354 = vlaneseq
    %v355 = vshrl.u32 %v354, 7
    %v356 = vsub.s32 0, %v355
    %v357 = vrot.slane %v352, %v356
    %v375 = vunpack.c.l.b16 %v336
    %v376 = vunpack.c.l.b16 %v337
    %v377 = vunpack.c.l.b16 %v338
    %v378 = vunpack.c.l.b16 %v339
    %v379 = vunpack.c.l.b16 %v340
    %v380 = vunpack.c.l.b16 %v341
    %v381 = vunpack.c.l.b16 %v342
    %v382 = vunpack.c.l.b16 %v343
    %v383 = vunpack.c.l.b16 %v344
    %v384 = vunpack.c.l.b16 %v345
    %v385 = vunpack.c.l.b16 %v346
    %v386 = vunpack.c.l.b16 %v347
    %v387 = vunpack.c.l.b16 %v348
    %v388 = vunpack.c.l.b16 %v349
    %v389 = vunpack.c.l.b16 %v350
    %v390 = vunpack.c.l.b16 %v351
    %v391 = vpack.c.b16 %v376, %v375
    %v392 = vpack.c.b16 %v378, %v377
    %v393 = vpack.c.b16 %v380, %v379
    %v394 = vpack.c.b16 %v382, %v381
    %v395 = vpack.c.b16 %v384, %v383
    %v396 = vpack.c.b16 %v386, %v385
    %v397 = vpack.c.b16 %v388, %v387
    %v398 = vpack.c.b16 %v390, %v389
    %407 = vmatprep.subr.bf16.mxu0 0
    %408 = vmatpush1.bf16.msra.mxu0 %v398
    %409 = vmatprep.subr.bf16.mxu0 0
    %410 = vmatpush1.bf16.msra.mxu0 %v397
    %411 = vmatprep.subr.bf16.mxu0 0
    %412 = vmatpush1.bf16.msra.mxu0 %v396
    %413 = vmatprep.subr.bf16.mxu0 0
    %414 = vmatpush1.bf16.msra.mxu0 %v395
    %415 = vmatprep.subr.bf16.mxu0 0
    %416 = vmatpush1.bf16.msra.mxu0 %v394
    %417 = vmatprep.subr.bf16.mxu0 0
    %418 = vmatpush1.bf16.msra.mxu0 %v393
    %419 = vmatprep.subr.bf16.mxu0 0
    %420 = vmatpush1.bf16.msra.mxu0 %v392
    %421 = vmatprep.subr.bf16.mxu0 0
    %422 = vmatpush1.bf16.msra.mxu0 %v391
    %423 = vmatprep.subr.bf16.mxu0 0
    %424 = vmatpush2.bf16.msra.mxu0 0
    %425 = vmatprep.subr.bf16.mxu0 0
    %426 = vmatpush2.bf16.msra.mxu0 0
    %427 = vmatprep.subr.bf16.mxu0 0
    %428 = vmatpush2.bf16.msra.mxu0 0
    %429 = vmatprep.subr.bf16.mxu0 0
    %430 = vmatpush2.bf16.msra.mxu0 0
    %431 = vmatprep.subr.bf16.mxu0 0
    %432 = vmatpush2.bf16.msra.mxu0 0
    %433 = vmatprep.subr.bf16.mxu0 0
    %434 = vmatpush2.bf16.msra.mxu0 0
    %435 = vmatprep.subr.bf16.mxu0 0
    %436 = vmatpush2.bf16.msra.mxu0 0
    %437 = vmatprep.subr.bf16.mxu0 0
    %438 = vmatpush2.bf16.msra.mxu0 0
    %439 = vmatprep.mubr.bf16.mxu0 0
    %440 = vmatmul.mubr.bf16.gmra.mxu0 %v335
    %v441 = vpop.f32.mrf.mxu0
    %v442 = vadd.f32 %v357, %v441
    %v443 = vpop.f32.mrf.mxu0
    %v444 = vpop.f32.mrf.mxu0
    %v445 = vpop.f32.mrf.mxu0
    %446 = vdwg.mxu0
    %v447 = vmax.f32 %v442, 0.0
    %v448 = vpack.c.bf16 %v447, %v447
    %v449 = vld [vmem:[%s7] sm:$0xf]
    %v450 = vld [vmem:[%s7 + $0x4] sm:$0xf]
    %v451 = vld [vmem:[%s7 + $0x8] sm:$0xf]
    %v452 = vld [vmem:[%s7 + $0xc] sm:$0xf]
    %v453 = vld [vmem:[%s7 + $0x10] sm:$0xf]
    %v454 = vld [vmem:[%s7 + $0x14] sm:$0xf]
    %v455 = vld [vmem:[%s7 + $0x18] sm:$0xf]
    %v456 = vld [vmem:[%s7 + $0x1c] sm:$0xf]
    %v457 = vld [vmem:[%s7 + $0x20] sm:$0xf]
    %v458 = vld [vmem:[%s7 + $0x24] sm:$0xf]
    %v459 = vld [vmem:[%s7 + $0x28] sm:$0xf]
    %v460 = vld [vmem:[%s7 + $0x2c] sm:$0xf]
    %v461 = vld [vmem:[%s7 + $0x30] sm:$0xf]
    %v462 = vld [vmem:[%s7 + $0x34] sm:$0xf]
    %v463 = vld [vmem:[%s7 + $0x38] sm:$0xf]
    %v464 = vld [vmem:[%s7 + $0x3c] sm:$0xf]
    %v465 = vld [vmem:[%s8] sm:$0x1]
    %v467 = vlaneseq
    %v468 = vshrl.u32 %v467, 7
    %v469 = vsub.s32 0, %v468
    %v470 = vrot.slane %v465, %v469
    %v488 = vunpack.c.l.b16 %v449
    %v489 = vunpack.c.l.b16 %v450
    %v490 = vunpack.c.l.b16 %v451
    %v491 = vunpack.c.l.b16 %v452
    %v492 = vunpack.c.l.b16 %v453
    %v493 = vunpack.c.l.b16 %v454
    %v494 = vunpack.c.l.b16 %v455
    %v495 = vunpack.c.l.b16 %v456
    %v496 = vunpack.c.l.b16 %v457
    %v497 = vunpack.c.l.b16 %v458
    %v498 = vunpack.c.l.b16 %v459
    %v499 = vunpack.c.l.b16 %v460
    %v500 = vunpack.c.l.b16 %v461
    %v501 = vunpack.c.l.b16 %v462
    %v502 = vunpack.c.l.b16 %v463
    %v503 = vunpack.c.l.b16 %v464
    %v504 = vpack.c.b16 %v489, %v488
    %v505 = vpack.c.b16 %v491, %v490
    %v506 = vpack.c.b16 %v493, %v492
    %v507 = vpack.c.b16 %v495, %v494
    %v508 = vpack.c.b16 %v497, %v496
    %v509 = vpack.c.b16 %v499, %v498
    %v510 = vpack.c.b16 %v501, %v500
    %v511 = vpack.c.b16 %v503, %v502
    %520 = vmatprep.subr.bf16.mxu0 0
    %521 = vmatpush1.bf16.msra.mxu0 %v511
    %522 = vmatprep.subr.bf16.mxu0 0
    %523 = vmatpush1.bf16.msra.mxu0 %v510
    %524 = vmatprep.subr.bf16.mxu0 0
    %525 = vmatpush1.bf16.msra.mxu0 %v509
    %526 = vmatprep.subr.bf16.mxu0 0
    %527 = vmatpush1.bf16.msra.mxu0 %v508
    %528 = vmatprep.subr.bf16.mxu0 0
    %529 = vmatpush1.bf16.msra.mxu0 %v507
    %530 = vmatprep.subr.bf16.mxu0 0
    %531 = vmatpush1.bf16.msra.mxu0 %v506
    %532 = vmatprep.subr.bf16.mxu0 0
    %533 = vmatpush1.bf16.msra.mxu0 %v505
    %534 = vmatprep.subr.bf16.mxu0 0
    %535 = vmatpush1.bf16.msra.mxu0 %v504
    %536 = vmatprep.subr.bf16.mxu0 0
    %537 = vmatpush2.bf16.msra.mxu0 0
    %538 = vmatprep.subr.bf16.mxu0 0
    %539 = vmatpush2.bf16.msra.mxu0 0
    %540 = vmatprep.subr.bf16.mxu0 0
    %541 = vmatpush2.bf16.msra.mxu0 0
    %542 = vmatprep.subr.bf16.mxu0 0
    %543 = vmatpush2.bf16.msra.mxu0 0
    %544 = vmatprep.subr.bf16.mxu0 0
    %545 = vmatpush2.bf16.msra.mxu0 0
    %546 = vmatprep.subr.bf16.mxu0 0
    %547 = vmatpush2.bf16.msra.mxu0 0
    %548 = vmatprep.subr.bf16.mxu0 0
    %549 = vmatpush2.bf16.msra.mxu0 0
    %550 = vmatprep.subr.bf16.mxu0 0
    %551 = vmatpush2.bf16.msra.mxu0 0
    %552 = vmatprep.mubr.bf16.mxu0 0
    %553 = vmatmul.mubr.bf16.gmra.mxu0 %v448
    %v554 = vpop.f32.mrf.mxu0
    %v555 = vadd.f32 %v470, %v554
    %v556 = vpop.f32.mrf.mxu0
    %v557 = vpop.f32.mrf.mxu0
    %v558 = vpop.f32.mrf.mxu0
    %559 = vdwg.mxu0
    %v560 = vxor.u32 %v555, 2147483648
    %v561 = vmul.f32 %v560, 1.442695
    %v562 = vpow.pop %v561
    %v563 = vadd.f32 %v562, 1.0
    %v564 = vrcp.pop %v563
    %v565 = vmul.f32 1.0, %v564
    %v566 = vmul.f32 %v565, 3.5
    %vm567 = vcmask 31744
    %568 = vst.msk [vmem:[%s9] sm:$0xff] %vm567, %v566
    // Predicated region
    $region54: #{actor_forward.1} parent=1 // pred_check
      _
    $region55: #{actor_forward.1} parent=1 // pred_check_branch
      %570 = sbr.rel (0) target = $region57
    $region56: #{actor_forward.1} parent=1 // pred_region
      _
    $region57: #{actor_forward.1} parent=1 // pred_fallthru
      _
    // Predicated region
    $region58: #{actor_forward.1} parent=1 // pred_check
      _
    $region59: #{actor_forward.1} parent=1 // pred_check_branch
      %572 = sbr.rel (0) target = $region61
    $region60: #{actor_forward.1} parent=1 // pred_region
      _
    $region61: #{actor_forward.1} parent=1 // pred_fallthru
      _
    %573 = vsyncpa [#allocation3], 1
    %574 = vsyncpa [#allocation5], 1
    %575 = vsyncpa [#allocation8], 1

</llo_original>
